<compile_context>
chip_gen: v7x
topology: tpu7x:2x2x1
jax: 0.10.0
libtpu: 0.0.40
codegen_flags: <defaults>
</compile_context>

<pallas_src>
import jax
import jax.numpy as jnp
from jax.experimental import pallas as pl
from jax.experimental.pallas import tpu as pltpu

_LANES = 128
_TILE_BYTES_CAP = 1 << 20      # ~1 MiB per input tile (largest dtype)
_SMALL_ELEMS = 1 << 18         # full-slab single-step path below this size
_VMEM_LIMIT = 32 * 1024 * 1024


def _sublane_pack(dtype):
    # 8 sublanes/vreg for 4-byte dtypes, 16 for 2-byte, 32 for 1-byte.
    return max(8, 32 // jnp.dtype(dtype).itemsize)


def _bce_elem(x, y):
    # torch BCE clamps the log terms at -100.  Clamp BEFORE the multiply so
    # y==0 / x==0 (and the pad values x=1,y=1) give 0 * (-100), never 0*(-inf).
    log_x = jnp.maximum(jnp.log(x), -100.0)
    log_1mx = jnp.maximum(jnp.log(1.0 - x), -100.0)
    return -(y * log_x + (1.0 - y) * log_1mx)


# ----------------------------------------------------------------------------
# Kernels
# ----------------------------------------------------------------------------
def _bce_full_kernel(n_ref, pred_ref, gt_ref, out_ref):
    # Small / unaligned path: one block covering the whole (N, Nc) slab.
    x = pred_ref[...].astype(jnp.float32)
    y = gt_ref[...].astype(jnp.float32)
    bce = _bce_elem(x, y)
    out_ref[...] = jnp.sum(bce, axis=(0, 1), keepdims=True) / n_ref[0, 0]


def _bce_tiled_kernel(n_ref, pred_ref, gt_ref, out_ref, acc_ref):
    # pred_ref / gt_ref : (tb, grp, 128) tiles in the inputs' native dtype
    # out_ref           : (1, 1, 1) f32 per-split partial (already / pred_num)
    # acc_ref           : (grp, 128) f32 resident accumulator
    i = pl.program_id(1)

    @pl.when(i == 0)
    def _():
        acc_ref[...] = jnp.zeros_like(acc_ref)

    x = pred_ref[...].astype(jnp.float32)
    y = gt_ref[...].astype(jnp.float32)
    bce = _bce_elem(x, y)

    # Leading-axis reduce: pure vreg-wise VPU adds, no XLU, tiny accumulator.
    acc_ref[...] += jnp.sum(bce, axis=0)

    @pl.when(i == pl.num_programs(1) - 1)
    def _():
        total = jnp.sum(acc_ref[...], axis=(0, 1), keepdims=True)  # one XLU reduce
        out_ref[...] = (total / n_ref[0, 0]).reshape(out_ref.shape)


# ----------------------------------------------------------------------------
# Tiling plan
# ----------------------------------------------------------------------------
def _plan(rb, tb_cap):
    """Pick (split, tb, steps, rb_pad) over `rb` group-rows of (grp, 128).

    Prefers plans with no padding; prefers a 2-way split so v7x's second
    TensorCore gets half the reduction (a no-op reordering on 1-TC chips).
    """
    def _exact(split):
        if rb % split:
            return None
        rs = rb // split
        cap = min(tb_cap, rs)
        for tb in range(cap, 0, -1):
            if rs % tb == 0:
                # Reject pathological tiny-tile plans (huge step counts).
                if rs // tb <= 64 or 4 * tb >= cap:
                    return split, tb, rs // tb, rb
                return None
        return None

    for split in (2, 1):
        plan = _exact(split)
        if plan is not None:
            return plan

    # Padded plan: near-cap tiles, minimal padding.
    split = 2 if rb >= 2 else 1
    rs = -(-rb // split)
    steps = max(1, -(-rs // tb_cap))
    tb = -(-rs // steps)
    return split, tb, steps, split * steps * tb


def _pad_batch0_lane_dense(a, rb_pad, grp):
    # Rare fallback (large-but-unaligned / pathological divisors): slice batch
    # 0, pad with 1s (zero BCE contribution) and view as (1, rb_pad, grp, 128).
    flat = a[0].reshape(-1)
    pad = rb_pad * grp * _LANES - flat.shape[0]
    flat = jnp.pad(flat, (0, pad), constant_values=1)
    return flat.reshape(1, rb_pad, grp, _LANES)


# ----------------------------------------------------------------------------
# pallas_call wrappers
# ----------------------------------------------------------------------------
def _run_full(n_arr, pred_perm, gt_perm):
    _, N, Nc = pred_perm.shape
    out = pl.pallas_call(
        _bce_full_kernel,
        out_shape=jax.ShapeDtypeStruct((1, 1), jnp.float32),
        grid=(1,),
        in_specs=[
            pl.BlockSpec(memory_space=pltpu.MemorySpace.SMEM),
            pl.BlockSpec((pl.Squeezed(), N, Nc), lambda i: (0, 0, 0)),
            pl.BlockSpec((pl.Squeezed(), N, Nc), lambda i: (0, 0, 0)),
        ],
        out_specs=pl.BlockSpec((1, 1), lambda i: (0, 0)),
        compiler_params=pltpu.CompilerParams(
            dimension_semantics=("arbitrary",),
            vmem_limit_bytes=_VMEM_LIMIT,
        ),
    )(n_arr, pred_perm, gt_perm)
    return out[0, 0]


def _run_tiled(n_arr, p_view, g_view, grp, split, tb, steps):
    def data_map(s, i):
        return (0, s * steps + i, 0, 0)

    data_block = (pl.Squeezed(), tb, grp, _LANES)
    out = pl.pallas_call(
        _bce_tiled_kernel,
        out_shape=jax.ShapeDtypeStruct((split, 1, 1), jnp.float32),
        grid=(split, steps),
        in_specs=[
            pl.BlockSpec(memory_space=pltpu.MemorySpace.SMEM),
            pl.BlockSpec(data_block, data_map),
            pl.BlockSpec(data_block, data_map),
        ],
        out_specs=pl.BlockSpec((1, 1, 1), lambda s, i: (s, 0, 0)),
        scratch_shapes=[pltpu.VMEM((grp, _LANES), jnp.float32)],
        compiler_params=pltpu.CompilerParams(
            dimension_semantics=("parallel", "arbitrary"),
            vmem_limit_bytes=_VMEM_LIMIT,
        ),
    )(n_arr, p_view, g_view)
    # Partials are already divided by pred_num; sum of (<=2) partials = loss.
    return jnp.sum(out)


def cross_entropy_loss_masked(pred_perm, gt_perm, pred_num):
    """Pallas implementation of CrossEntropyloss_masked.forward."""
    B, N, Nc = pred_perm.shape
    M = N * Nc
    n_arr = jnp.asarray(pred_num, jnp.float32).reshape(1, 1)

    # TODO(synk): the torch assertions (all values in [0,1], print + raise) are
    # host-side runtime checks; not reproduced in the kernel (values outside
    # [0,1] are silently clamped by the -100 log clamp instead).

    grp = max(_sublane_pack(pred_perm.dtype), _sublane_pack(gt_perm.dtype))
    group_elems = grp * _LANES
    itemsize = max(jnp.dtype(pred_perm.dtype).itemsize,
                   jnp.dtype(gt_perm.dtype).itemsize)
    tb_cap = max(1, _TILE_BYTES_CAP // (group_elems * itemsize))

    if M % group_elems == 0:
        rb = M // group_elems
        split, tb, steps, rb_pad = _plan(rb, tb_cap)
        if rb_pad == rb:
            # Free contiguous reshape to a lane-dense view; batch 0 is selected
            # inside the BlockSpec, so no HBM copy and no wrapper-side cast.
            p_view = pred_perm.reshape(B, rb, grp, _LANES)
            g_view = gt_perm.reshape(B, rb, grp, _LANES)
        else:
            p_view = _pad_batch0_lane_dense(pred_perm, rb_pad, grp)
            g_view = _pad_batch0_lane_dense(gt_perm, rb_pad, grp)
        return _run_tiled(n_arr, p_view, g_view, grp, split, tb, steps)

    if M <= _SMALL_ELEMS:
        # Small / unaligned: single full-slab block (trailing block dims equal
        # the array dims, so any sub-(8,128) layout is legal) -- zero copies.
        return _run_full(n_arr, pred_perm, gt_perm)

    # Rare: large but not lane-aligned -- pad to a lane-dense slab.
    rb_raw = -(-M // group_elems)
    split, tb, steps, rb_pad = _plan(rb_raw, tb_cap)
    p_view = _pad_batch0_lane_dense(pred_perm, rb_pad, grp)
    g_view = _pad_batch0_lane_dense(gt_perm, rb_pad, grp)
    return _run_tiled(n_arr, p_view, g_view, grp, split, tb, steps)


# ----------------------------------------------------------------------------
# Reference + test
# ----------------------------------------------------------------------------
def _reference(pred_perm, gt_perm, pred_num):
    x = pred_perm[0].astype(jnp.float32)
    y = gt_perm[0].astype(jnp.float32)
    log_x = jnp.maximum(jnp.log(x), -100.0)
    log_1mx = jnp.maximum(jnp.log(1.0 - x), -100.0)
    loss = jnp.sum(-(y * log_x + (1.0 - y) * log_1mx))
    return loss / jnp.asarray(pred_num, jnp.float32)


def _make_inputs(key, B, N, pred_dtype=jnp.float32, gt_dtype=jnp.float32):
    k1, k2 = jax.random.split(key)
    logits = jax.random.normal(k1, (B, N, N), dtype=jnp.float32)
    pred_perm = jax.nn.softmax(logits, axis=-1).astype(pred_dtype)
    perm_idx = jax.random.permutation(k2, N)
    gt0 = jnp.eye(N, dtype=jnp.float32)[perm_idx]
    gt_perm = jnp.stack([gt0, jnp.eye(N, dtype=jnp.float32)], axis=0).astype(gt_dtype)
    return pred_perm, gt_perm


if __name__ == "__main__":
    key = jax.random.PRNGKey(0)
    k1, k2, k3 = jax.random.split(key, 3)

    # 1) Small / unaligned case -> zero-copy full-slab path.
    pred_a, gt_a = _make_inputs(k1, B=2, N=16)
    loss_a = cross_entropy_loss_masked(pred_a, gt_a, jnp.float32(16))
    jax.block_until_ready(loss_a)
    ref_a = _reference(pred_a, gt_a, jnp.float32(16))
    assert jnp.allclose(loss_a, ref_a, rtol=1e-5, atol=1e-4), (loss_a, ref_a)

    # 2) Aligned f32 case -> zero-copy lane-dense tiles, 2-way split grid.
    pred_b, gt_b = _make_inputs(k2, B=2, N=128)
    loss_b = cross_entropy_loss_masked(pred_b, gt_b, jnp.float32(128))
    jax.block_until_ready(loss_b)
    ref_b = _reference(pred_b, gt_b, jnp.float32(128))
    assert jnp.allclose(loss_b, ref_b, rtol=1e-5, atol=1e-4), (loss_b, ref_b)

    # 3) Mixed-dtype case (bf16 pred, f32 gt) -> dtype-aware (16,128) grouping.
    pred_c, gt_c = _make_inputs(k3, B=2, N=128, pred_dtype=jnp.bfloat16)
    loss_c = cross_entropy_loss_masked(pred_c, gt_c, jnp.float32(128))
    jax.block_until_ready(loss_c)
    ref_c = _reference(pred_c, gt_c, jnp.float32(128))
    assert jnp.allclose(loss_c, ref_c, rtol=1e-5, atol=1e-4), (loss_c, ref_c)

    print("KERNEL_OK")
</pallas_src>

<mosaic_0001>
module attributes {stable_mosaic.version = 11 : i64} {
  func.func @_bce_full_kernel(%arg0: i32, %arg1: memref<1x1xf32, #tpu.memory_space<smem>>, %arg2: memref<1x16x16xf32, #tpu.memory_space<vmem>>, %arg3: memref<1x16x16xf32, #tpu.memory_space<vmem>>, %arg4: memref<1x1xf32, #tpu.memory_space<vmem>>) attributes {dimension_semantics = [#tpu.dimension_semantics<arbitrary>], iteration_bounds = array<i64: 1>, scalar_prefetch = 0 : i64, scratch_operands = 0 : i64, tpu.core_type = #tpu.core_type<tc>, window_params = [{transform_indices = @transform_0, window_bounds = array<i64: 1, 1>}, {transform_indices = @transform_1, window_bounds = array<i64: 1, 16, 16>}, {transform_indices = @transform_2, window_bounds = array<i64: 1, 16, 16>}, {pipeline_mode = #tpu.pipeline_mode<synchronous>, transform_indices = @transform_3, window_bounds = array<i64: 1, 1>}]} {
    %c0 = arith.constant 0 : index
    %c0_0 = arith.constant 0 : index
    %c0_1 = arith.constant 0 : index
    %0 = vector.load %arg2[%c0, %c0_0, %c0_1] : memref<1x16x16xf32, #tpu.memory_space<vmem>>, vector<1x16x16xf32>
    %1 = vector.shape_cast %0 : vector<1x16x16xf32> to vector<16x16xf32>
    %c0_2 = arith.constant 0 : index
    %c0_3 = arith.constant 0 : index
    %c0_4 = arith.constant 0 : index
    %2 = vector.load %arg3[%c0_2, %c0_3, %c0_4] : memref<1x16x16xf32, #tpu.memory_space<vmem>>, vector<1x16x16xf32>
    %3 = vector.shape_cast %2 : vector<1x16x16xf32> to vector<16x16xf32>
    %4 = math.log %1 : vector<16x16xf32>
    %cst = arith.constant -1.000000e+02 : f32
    %5 = vector.broadcast %cst : f32 to vector<16x16xf32>
    %6 = arith.maximumf %4, %5 : vector<16x16xf32>
    %cst_5 = arith.constant 1.000000e+00 : f32
    %7 = vector.broadcast %cst_5 : f32 to vector<16x16xf32>
    %8 = arith.subf %7, %1 : vector<16x16xf32>
    %9 = math.log %8 : vector<16x16xf32>
    %cst_6 = arith.constant -1.000000e+02 : f32
    %10 = vector.broadcast %cst_6 : f32 to vector<16x16xf32>
    %11 = arith.maximumf %9, %10 : vector<16x16xf32>
    %12 = arith.mulf %3, %6 : vector<16x16xf32>
    %cst_7 = arith.constant 1.000000e+00 : f32
    %13 = vector.broadcast %cst_7 : f32 to vector<16x16xf32>
    %14 = arith.subf %13, %3 : vector<16x16xf32>
    %15 = arith.mulf %14, %11 : vector<16x16xf32>
    %16 = arith.addf %12, %15 : vector<16x16xf32>
    %cst_8 = arith.constant 0.000000e+00 : f32
    %17 = vector.broadcast %cst_8 : f32 to vector<16x16xf32>
    %18 = arith.subf %17, %16 : vector<16x16xf32>
    %19 = vector.shape_cast %18 : vector<16x16xf32> to vector<1x16x16xf32>
    %cst_9 = arith.constant dense<0.000000e+00> : vector<1xf32>
    %20 = vector.multi_reduction <add>, %19, %cst_9 [1, 2] : vector<1x16x16xf32> to vector<1xf32>
    %21 = vector.shape_cast %20 : vector<1xf32> to vector<1x1x1xf32>
    %22 = vector.extract %21[0, 0, 0] : f32 from vector<1x1x1xf32>
    %23 = vector.broadcast %22 : f32 to vector<1x1xf32>
    %c0_10 = arith.constant 0 : index
    %c0_11 = arith.constant 0 : index
    %24 = memref.load %arg1[%c0_10, %c0_11] : memref<1x1xf32, #tpu.memory_space<smem>>
    %25 = vector.broadcast %24 : f32 to vector<1x1xf32>
    %26 = arith.divf %23, %25 : vector<1x1xf32>
    %c0_12 = arith.constant 0 : index
    %c0_13 = arith.constant 0 : index
    %27 = vector.load %arg4[%c0_12, %c0_13] : memref<1x1xf32, #tpu.memory_space<vmem>>, vector<1x1xf32>
    tpu.vector_store %arg4[%c0_12, %c0_13], %26 {strides = array<i32>} : memref<1x1xf32, #tpu.memory_space<vmem>>, vector<1x1xf32>,
    return
  }
  func.func @transform_0(%arg0: i32) -> (i32, i32) {
    %c0_i32 = arith.constant 0 : i32
    %c0_i32_0 = arith.constant 0 : i32
    %c0_i32_1 = arith.constant 0 : i32
    return %c0_i32, %c0_i32_0 : i32, i32
  }
  func.func @transform_1(%arg0: i32) -> (i32, i32, i32) {
    %c0_i32 = arith.constant 0 : i32
    %c0_i32_0 = arith.constant 0 : i32
    %c0_i32_1 = arith.constant 0 : i32
    %c0_i32_2 = arith.constant 0 : i32
    return %c0_i32, %c0_i32_0, %c0_i32_1 : i32, i32, i32
  }
  func.func @transform_2(%arg0: i32) -> (i32, i32, i32) {
    %c0_i32 = arith.constant 0 : i32
    %c0_i32_0 = arith.constant 0 : i32
    %c0_i32_1 = arith.constant 0 : i32
    %c0_i32_2 = arith.constant 0 : i32
    return %c0_i32, %c0_i32_0, %c0_i32_1 : i32, i32, i32
  }
  func.func @transform_3(%arg0: i32) -> (i32, i32) {
    %c0_i32 = arith.constant 0 : i32
    %c0_i32_0 = arith.constant 0 : i32
    %c0_i32_1 = arith.constant 0 : i32
    return %c0_i32, %c0_i32_0 : i32, i32
  }
}

</mosaic_0001>

<llo_original>
// kernel: tpu_custom_call.1
$region0: #{tpu_custom_call.1}
  #allocation0 [shape = 'u32[]', space=smem, size = 0x4, offset = 0x4, fixed_abs, tag = 'smem constant byte address 0x4 - core index']
  #allocation1 [shape = 'u32[144,128]{1,0:T(1,128)}', space=vmem, size = 0x12000, scoped, tag = 'internal scratch']
  #allocation2 [shape = 'f32[1,1]{1,0:T(1,128)S(6)}', space=smem, size = 0x200, scoped, tag = 'scoped memory for tpu_custom_call.1']
  %s0 = inlined_call_operand.<no memory space> [shape: f32[1,1], index: 0, kind: input, shape index: {}]
  %s1 = inlined_call_operand.hbm [shape: f32[2,16,16], index: 1, kind: input, shape index: {}]
  %s2 = inlined_call_operand.hbm [shape: f32[2,16,16], index: 2, kind: input, shape index: {}]
  %s3 = inlined_call_operand.hbm [shape: f32[1,1], index: 3, kind: output, shape index: {}]
  %s4 = sld [smem:[#allocation0]]
  $region30: #{tpu_custom_call.1} parent=0
    _
  %s6 = ssub.s32 1, %s4
  %s7 = scalar_select 0, %s6, %s4
  %8 = sst [smem:[#allocation2]] %s0
  $region1: #{tpu_custom_call.1} parent=0
    #allocation3 [shape = 'u8[8192]{0}', space=vmem, size = 0x2000, scoped, tag = 'input window, operand 1, single buffered']
    #allocation4 [shape = 's32[1]{0}', space=sflag, size = 0x4, scoped, tag = 'scoped memory for tpu_custom_call.1']
    #allocation5 [shape = 's32[1]{0}', space=sflag, size = 0x4, scoped, tag = 'scoped memory for tpu_custom_call.1']
    #allocation6 [shape = 'u8[8192]{0}', space=vmem, size = 0x2000, scoped, tag = 'input window, operand 2, single buffered']
    #allocation7 [shape = 's32[1]{0}', space=sflag, size = 0x4, scoped, tag = 'scoped memory for tpu_custom_call.1']
    #allocation8 [shape = 'u8[512]{0}', space=vmem, size = 0x400, scoped, tag = 'output window, operand 0, single buffered']
    %9 = vsyncpa [#allocation4], 0
    %10 = vsyncpa [#allocation7], 0
    %11 = vsyncpa [#allocation5], 0
    // Predicated region
    $region2: #{tpu_custom_call.1} parent=1 // pred_check
      _
    $region3: #{tpu_custom_call.1} parent=1 // pred_check_branch
      %13 = sbr.rel (0) target = $region5
    $region4: #{tpu_custom_call.1} parent=1 // pred_region
      _
    $region5: #{tpu_custom_call.1} parent=1 // pred_fallthru
      _
    // Predicated region
    $region6: #{tpu_custom_call.1} parent=1 // pred_check
      _
    $region7: #{tpu_custom_call.1} parent=1 // pred_check_branch
      %15 = sbr.rel (0) target = $region9
    $region8: #{tpu_custom_call.1} parent=1 // pred_region
      %s17 = ssub.s32 256, 256
      %18 = vsyncadd [#allocation4], %s17
      %s19 = sshll.u32 [#allocation3], 4
      %s20 = int_to_ptr.vmem [resolvable:$true] %s19
      %25 = dma.hbm_to_vmem [thread:$0]  %s1, 256, %s20, [#allocation4], 128, 128, 8
    $region9: #{tpu_custom_call.1} parent=1 // pred_fallthru
      _
    // Predicated region
    $region10: #{tpu_custom_call.1} parent=1 // pred_check
      _
    $region11: #{tpu_custom_call.1} parent=1 // pred_check_branch
      %27 = sbr.rel (0) target = $region13
    $region12: #{tpu_custom_call.1} parent=1 // pred_region
      %s29 = ssub.s32 256, 256
      %30 = vsyncadd [#allocation7], %s29
      %s31 = sshll.u32 [#allocation6], 4
      %s32 = int_to_ptr.vmem [resolvable:$true] %s31
      %37 = dma.hbm_to_vmem [thread:$0]  %s2, 256, %s32, [#allocation7], 128, 128, 8
    $region13: #{tpu_custom_call.1} parent=1 // pred_fallthru
      _
    // Predicated region
    $region14: #{tpu_custom_call.1} parent=1 // pred_check
      _
    $region15: #{tpu_custom_call.1} parent=1 // pred_check_branch
      %39 = sbr.rel (0) target = $region17
    $region16: #{tpu_custom_call.1} parent=1 // pred_region
      %40 = dma.done [#allocation4], 256
    $region17: #{tpu_custom_call.1} parent=1 // pred_fallthru
      _
    // Predicated region
    $region18: #{tpu_custom_call.1} parent=1 // pred_check
      _
    $region19: #{tpu_custom_call.1} parent=1 // pred_check_branch
      %42 = sbr.rel (0) target = $region21
    $region20: #{tpu_custom_call.1} parent=1 // pred_region
      %43 = dma.done [#allocation7], 256
    $region21: #{tpu_custom_call.1} parent=1 // pred_fallthru
      _
    %v44 = vld [vmem:[#allocation3] sm:$0xff]
    %v45 = vld [vmem:[#allocation3 + $0x8] sm:$0xff]
    %v46 = vld [vmem:[#allocation6] sm:$0xff]
    %v47 = vld [vmem:[#allocation6 + $0x8] sm:$0xff]
    %v48 = vlog2.pop %v44
    %v49 = vmul.f32 %v48, 0.6931472
    %v50 = vlog2.pop %v45
    %v51 = vmul.f32 %v50, 0.6931472
    %v52 = vmax.f32 %v49, -100.0
    %v53 = vmax.f32 %v51, -100.0
    %v54 = vsub.f32 1.0, %v44
    %v55 = vsub.f32 1.0, %v45
    %v56 = vlog2.pop %v54
    %v57 = vmul.f32 %v56, 0.6931472
    %v58 = vlog2.pop %v55
    %v59 = vmul.f32 %v58, 0.6931472
    %v60 = vmax.f32 %v57, -100.0
    %v61 = vmax.f32 %v59, -100.0
    %v62 = vmul.f32 %v46, %v52
    %v63 = vmul.f32 %v47, %v53
    %v64 = vsub.f32 1.0, %v46
    %v65 = vsub.f32 1.0, %v47
    %v66 = vmul.f32 %v64, %v60
    %v67 = vmul.f32 %v65, %v61
    %v68 = vadd.f32 %v62, %v66
    %v69 = vadd.f32 %v63, %v67
    %v70 = vsub.f32 0.0, %v68
    %v71 = vsub.f32 0.0, %v69
    %vm72 = vcmask 130048
    %v73 = vsel %vm72, %v70, 0.0
    %v74 = vsel %vm72, %v71, 0.0
    %v75 = vadd.f32 %v73, %v74
    %76 = vadd.xlane.f32.xlu0 %v75
    %v77 = vpop.xlane.xlu0 %76
    %v78 = vrot.slane %v77, 4
    %v79 = vadd.f32 %v77, %v78
    %v80 = vrot.slane %v79, 2
    %v81 = vadd.f32 %v79, %v80
    %v82 = vrot.slane %v81, 1
    %v83 = vadd.f32 %v81, %v82
    %s84 = vtos %v83
    %v85 = vstv %s84
    %s86 = sld [smem:[#allocation2]]
    %v87 = vstv %s86
    %v88 = vrcp.pop %v87
    %v89 = vmul.f32 %v85, %v88
    %vm90 = vcmask 0
    %91 = vst.msk [vmem:[#allocation8] sm:$0x1] %vm90, %v89
    // Predicated region
    $region22: #{tpu_custom_call.1} parent=1 // pred_check
      _
    $region23: #{tpu_custom_call.1} parent=1 // pred_check_branch
      %93 = sbr.rel (0) target = $region25
    $region24: #{tpu_custom_call.1} parent=1 // pred_region
      %s95 = ssub.s32 16, 16
      %96 = vsyncadd [#allocation5], %s95
      %s98 = sshll.u32 [#allocation8], 4
      %s99 = int_to_ptr.vmem [resolvable:$true] %s98
      %101 = dma.vmem_to_hbm [thread:$0]  %s99, 16, %s3, [#allocation5]
    $region25: #{tpu_custom_call.1} parent=1 // pred_fallthru
      _
    // Predicated region
    $region26: #{tpu_custom_call.1} parent=1 // pred_check
      _
    $region27: #{tpu_custom_call.1} parent=1 // pred_check_branch
      %103 = sbr.rel (0) target = $region29
    $region28: #{tpu_custom_call.1} parent=1 // pred_region
      %104 = dma.done [#allocation5], 16
    $region29: #{tpu_custom_call.1} parent=1 // pred_fallthru
      _
    %105 = vsyncpa [#allocation4], 1
    %106 = vsyncpa [#allocation7], 1
    %107 = vsyncpa [#allocation5], 1

</llo_original>
